<compile_context>
chip_gen: v5e
topology: v5e:2x2
jax: 0.10.0
libtpu: 0.0.40
codegen_flags: <defaults>
</compile_context>

<pallas_src>
import math
from functools import partial

import jax
import jax.numpy as jnp
from jax import lax
from jax.experimental import pallas as pl
from jax.experimental.pallas import tpu as pltpu


# ---------------------------------------------------------------------------
# Host-side (one-time) parameter relayout
# ---------------------------------------------------------------------------
def prepare_mha_params(w_qkv, w_out, b_out, *, num_heads):
    """Regroup the module's per-head-interleaved qkv columns [h:(q,k,v)] into
    [Q_all | K_all | V_all] (head-major within each group) and fold the
    1/sqrt(head_dim) softmax scale into the Q columns.
    In a real model call this once at parameter-load time, not per forward."""
    inp_dim, three_dm = w_qkv.shape
    d_model = three_dm // 3
    head_dim = d_model // num_heads
    scale = 1.0 / math.sqrt(head_dim)
    w = w_qkv.reshape(inp_dim, num_heads, 3, head_dim).transpose(0, 2, 1, 3)  # (inp,3,H,hd)
    w = w.at[:, 0].multiply(scale)  # fold softmax scale into the Q projection
    w_qkv_grouped = w.reshape(inp_dim, 3 * d_model)
    return w_qkv_grouped, w_out, b_out.reshape(1, d_model)


# ---------------------------------------------------------------------------
# Kernel 1: QKV projection
# ---------------------------------------------------------------------------
def _qkv_proj_kernel(x_ref, w_ref, q_ref, k_ref, v_ref, *, num_heads, head_dim):
    # x_ref:   (1, TS, inp_dim)          native dtype
    # w_ref:   (inp_dim, 3*d_model)      grouped [Q_all | K_all | V_all], head-major
    # q/k/v_ref: (1, H, TS, hd)
    d_model = num_heads * head_dim
    x = x_ref[0]
    # Three matmuls against static (lane-aligned for d_model % 128 == 0) column
    # thirds of the grid-resident weight: bounds the live f32 intermediate to
    # one third and lets each result be cast to the output dtype exactly once.
    for g, out_ref in enumerate((q_ref, k_ref, v_ref)):
        y = jnp.dot(x, w_ref[:, g * d_model:(g + 1) * d_model],
                    preferred_element_type=jnp.float32)          # (TS, d_model) f32
        y = y.astype(out_ref.dtype)                               # cast once, then slice
        for h in range(num_heads):
            out_ref[0, h] = y[:, h * head_dim:(h + 1) * head_dim]


# ---------------------------------------------------------------------------
# Kernel 2: flash attention (online softmax) + fused output projection
# ---------------------------------------------------------------------------
def _flash_attn_out_kernel(q_ref, k_ref, v_ref, w_ref, b_ref, o_ref,
                           m_sc, l_sc, acc_sc, proj_sc,
                           *, num_heads, head_dim, kv_len, need_mask):
    # q_ref: (1, H, TQ, hd); k_ref/v_ref: (1, H, TK, hd)   native dtype, Q pre-scaled
    # w_ref: (d_model, d_model); b_ref: (1, d_model); o_ref: (1, TQ, d_model)
    # m_sc/l_sc: (H, TQ, 1) f32; acc_sc: (H, TQ, hd) f32; proj_sc: (TQ, d_model)
    ki = pl.program_id(2)
    tk = k_ref.shape[2]

    @pl.when(ki == 0)
    def _init():
        m_sc[...] = jnp.full(m_sc.shape, -jnp.inf, dtype=m_sc.dtype)
        l_sc[...] = jnp.zeros(l_sc.shape, dtype=l_sc.dtype)
        acc_sc[...] = jnp.zeros(acc_sc.shape, dtype=acc_sc.dtype)

    q = q_ref[0]                               # (H, TQ, hd) — scale already folded in
    k = k_ref[0]                               # (H, TK, hd)
    v = v_ref[0]                               # (H, TK, hd)

    # Scores: contraction on the last dim (no k.T), native-dtype MXU inputs,
    # f32 accumulation.
    s = jnp.einsum("hqd,hkd->hqk", q, k,
                   preferred_element_type=jnp.float32)            # (H, TQ, TK) f32

    if need_mask:
        # Keys beyond the true sequence length are padding: mask before max/exp.
        kidx = ki * tk + lax.broadcasted_iota(jnp.int32, (1, 1, tk), 2)
        s = jnp.where(kidx < kv_len, s, -1e30)

    # Online softmax update (statistics kept in f32 scratch).
    m_prev = m_sc[...]
    m_new = jnp.maximum(m_prev, jnp.max(s, axis=-1, keepdims=True))
    alpha = jnp.exp(m_prev - m_new)
    # TODO(synk): on v6e/v7x compute p in bf16 (bf16 EUP) once the KV stream is hidden.
    p = jnp.exp(s - m_new)
    l_sc[...] = alpha * l_sc[...] + jnp.sum(p, axis=-1, keepdims=True)
    acc_sc[...] = alpha * acc_sc[...] + jnp.einsum(
        "hqk,hkd->hqd", p.astype(v.dtype), v, preferred_element_type=jnp.float32)
    m_sc[...] = m_new

    @pl.when(ki == pl.num_programs(2) - 1)
    def _finalize():
        # Exact EUP reciprocal: off the VALU path, essentially free.
        vals = acc_sc[...] * pl.reciprocal(l_sc[...], approx=False)   # (H, TQ, hd)
        # Re-pack heads into one lane-dense (TQ, d_model) operand via cheap
        # static-slice VMEM stores, then do a SINGLE full-depth (K = d_model)
        # output-projection matmul instead of H K=head_dim matmuls.
        for h in range(num_heads):
            proj_sc[:, h * head_dim:(h + 1) * head_dim] = vals[h].astype(proj_sc.dtype)
        out = jnp.dot(proj_sc[...], w_ref[...], preferred_element_type=jnp.float32)
        o_ref[0] = (out + b_ref[...].astype(jnp.float32)).astype(o_ref.dtype)


# ---------------------------------------------------------------------------
# Wrapper
# ---------------------------------------------------------------------------
def _round_up(x, m):
    return (x + m - 1) // m * m


def _pick_blocks(block_q, block_kv):
    """Per-generation tile defaults: arithmetic intensity of the KV stream is
    ~block_q flops/byte, so bigger q tiles move the kernel toward MXU-bound."""
    if block_q is not None and block_kv is not None:
        return block_q, block_kv
    kind = ""
    try:
        kind = jax.devices()[0].device_kind.lower()
    except Exception:
        pass
    if "v6" in kind:
        dq, dk = 512, 128
    elif "v5" in kind:
        dq, dk = 256, 128
    else:                       # v7x (64 MiB VMEM/TC) or unknown: keep tiles modest
        dq, dk = 256, 128
    return (block_q or dq), (block_kv or dk)


def _vmem_limit_bytes():
    try:
        cap = pltpu.get_tpu_info().vmem_capacity_bytes
        return int(max(32 * 1024 * 1024, min(int(cap * 0.75), 96 * 1024 * 1024)))
    except Exception:
        return 48 * 1024 * 1024


def multi_head_attention(x, w_qkv, w_out, b_out, *, num_heads,
                         block_q=None, block_kv=None):
    """x: (B, S, inp_dim); w_qkv: (inp_dim, 3*d_model) in the module's
    per-head-interleaved column order; w_out: (d_model, d_model) stored as
    x @ W (transposed vs PyTorch); b_out: (d_model,). Returns (B, S, d_model)."""
    # TODO(synk): optional additive attention mask is not plumbed through.
    B, S, inp_dim = x.shape
    d_model = w_qkv.shape[1] // 3
    head_dim = d_model // num_heads
    H = num_heads

    # TODO(synk): hoist this relayout to parameter-load time in a real model.
    w_qkv_grouped, w_out_full, b_out2 = prepare_mha_params(
        w_qkv, w_out, b_out, num_heads=num_heads)

    bq, bk = _pick_blocks(block_q, block_kv)
    tq = min(bq, _round_up(S, 8))
    tk = min(bk, _round_up(S, 8))
    ts = tq                                     # qkv-projection row tile
    s_pad = _round_up(S, math.lcm(tq, tk))
    need_mask = s_pad != S
    x_p = jnp.pad(x, ((0, 0), (0, s_pad - S), (0, 0))) if need_mask else x

    vmem_limit = _vmem_limit_bytes()

    # --- pass 1: QKV projection ------------------------------------------------
    qkv_kernel = partial(_qkv_proj_kernel, num_heads=H, head_dim=head_dim)
    q, k, v = pl.pallas_call(
        qkv_kernel,
        out_shape=[jax.ShapeDtypeStruct((B, H, s_pad, head_dim), x.dtype)] * 3,
        grid_spec=pltpu.PrefetchScalarGridSpec(
            num_scalar_prefetch=0,
            grid=(B, s_pad // ts),
            in_specs=[
                pl.BlockSpec((1, ts, inp_dim), lambda b, si: (b, si, 0)),
                # TODO(synk): K-tile / column-tile the weight for d_model >= 2048
                # (resident bf16 weight gets tight under v7x's 64 MiB VMEM).
                pl.BlockSpec((inp_dim, 3 * d_model), lambda b, si: (0, 0)),
            ],
            out_specs=[
                pl.BlockSpec((1, H, ts, head_dim), lambda b, si: (b, 0, si, 0))
            ] * 3,
        ),
        compiler_params=pltpu.CompilerParams(
            dimension_semantics=("parallel", "parallel"),
            vmem_limit_bytes=vmem_limit),
    )(x_p, w_qkv_grouped)

    # --- pass 2: flash attention + fused output projection ---------------------
    attn_kernel = partial(_flash_attn_out_kernel, num_heads=H, head_dim=head_dim,
                          kv_len=S, need_mask=need_mask)
    out = pl.pallas_call(
        attn_kernel,
        out_shape=jax.ShapeDtypeStruct((B, s_pad, d_model), x.dtype),
        grid_spec=pltpu.PrefetchScalarGridSpec(
            num_scalar_prefetch=0,
            grid=(B, s_pad // tq, s_pad // tk),
            in_specs=[
                pl.BlockSpec((1, H, tq, head_dim), lambda b, qi, ki: (b, 0, qi, 0)),
                pl.BlockSpec((1, H, tk, head_dim), lambda b, qi, ki: (b, 0, ki, 0)),
                pl.BlockSpec((1, H, tk, head_dim), lambda b, qi, ki: (b, 0, ki, 0)),
                pl.BlockSpec((d_model, d_model), lambda b, qi, ki: (0, 0)),
                pl.BlockSpec((1, d_model), lambda b, qi, ki: (0, 0)),
            ],
            out_specs=pl.BlockSpec((1, tq, d_model), lambda b, qi, ki: (b, qi, 0)),
            scratch_shapes=[
                pltpu.VMEM((H, tq, 1), jnp.float32),            # running max m
                pltpu.VMEM((H, tq, 1), jnp.float32),            # running sum l
                pltpu.VMEM((H, tq, head_dim), jnp.float32),     # un-normalized acc
                pltpu.VMEM((tq, d_model), w_out_full.dtype),    # lane-dense proj input
            ],
        ),
        compiler_params=pltpu.CompilerParams(
            dimension_semantics=("parallel", "parallel", "arbitrary"),
            vmem_limit_bytes=vmem_limit),
    )(q, k, v, w_out_full, b_out2)

    return out[:, :S] if need_mask else out


# ---------------------------------------------------------------------------
# Pure-JAX reference mirroring the PyTorch module exactly
# ---------------------------------------------------------------------------
def multi_head_attention_ref(x, w_qkv, w_out, b_out, *, num_heads):
    B, S, _ = x.shape
    d_model = w_out.shape[0]
    head_dim = d_model // num_heads
    qkv = jnp.einsum("bsi,io->bso", x, w_qkv)
    qkv = qkv.reshape(B, S, num_heads, 3 * head_dim).transpose(0, 2, 1, 3)
    q, k, v = jnp.split(qkv, 3, axis=-1)
    scores = jnp.einsum("bhqd,bhkd->bhqk", q, k) / math.sqrt(head_dim)
    attn = jax.nn.softmax(scores, axis=-1)
    vals = jnp.einsum("bhqk,bhkd->bhqd", attn, v)
    vals = vals.transpose(0, 2, 1, 3).reshape(B, S, d_model)
    return jnp.einsum("bsd,de->bse", vals, w_out) + b_out


if __name__ == "__main__":
    batch, seq, inp_dim, d_model, num_heads = 2, 8, 16, 32, 4

    key = jax.random.PRNGKey(0)
    kx, kqkv, kw, kb = jax.random.split(key, 4)

    x = jax.random.normal(kx, (batch, seq, inp_dim), dtype=jnp.float32)
    # PyTorch stores (out, in); we keep the transposed (in, out) layout so the
    # kernel computes plain x @ W (same math as x @ W.T in PyTorch).
    w_qkv = jax.random.normal(kqkv, (inp_dim, 3 * d_model), dtype=jnp.float32) * 0.05
    w_out = jax.random.normal(kw, (d_model, d_model), dtype=jnp.float32) * 0.05
    b_out = jax.random.normal(kb, (d_model,), dtype=jnp.float32) * 0.05

    out = multi_head_attention(x, w_qkv, w_out, b_out, num_heads=num_heads)
    out = jax.block_until_ready(out)

    ref = multi_head_attention_ref(x, w_qkv, w_out, b_out, num_heads=num_heads)
    assert out.shape == (batch, seq, d_model)
    assert jnp.allclose(out, ref, atol=2e-3, rtol=2e-3), "mismatch vs reference"

    print("KERNEL_OK")
</pallas_src>

<mosaic_0001>
module attributes {stable_mosaic.version = 11 : i64} {
  func.func @_qkv_proj_kernel(%arg0: i32, %arg1: i32, %arg2: memref<1x8x16xf32, #tpu.memory_space<vmem>>, %arg3: memref<16x96xf32, #tpu.memory_space<vmem>>, %arg4: memref<1x4x8x8xf32, #tpu.memory_space<vmem>>, %arg5: memref<1x4x8x8xf32, #tpu.memory_space<vmem>>, %arg6: memref<1x4x8x8xf32, #tpu.memory_space<vmem>>) attributes {dimension_semantics = [#tpu.dimension_semantics<parallel>, #tpu.dimension_semantics<parallel>], iteration_bounds = array<i64: 2, 1>, scalar_prefetch = 0 : i64, scratch_operands = 0 : i64, tpu.core_type = #tpu.core_type<tc>, window_params = [{transform_indices = @transform_0, window_bounds = array<i64: 1, 8, 16>}, {pipeline_mode = #tpu.pipeline_mode<synchronous>, transform_indices = @transform_1, window_bounds = array<i64: 16, 96>}, {transform_indices = @transform_2, window_bounds = array<i64: 1, 4, 8, 8>}, {transform_indices = @transform_3, window_bounds = array<i64: 1, 4, 8, 8>}, {transform_indices = @transform_4, window_bounds = array<i64: 1, 4, 8, 8>}]} {
    %c0 = arith.constant 0 : index
    %c0_0 = arith.constant 0 : index
    %c0_1 = arith.constant 0 : index
    %0 = vector.load %arg2[%c0, %c0_0, %c0_1] : memref<1x8x16xf32, #tpu.memory_space<vmem>>, vector<1x8x16xf32>
    %1 = vector.shape_cast %0 : vector<1x8x16xf32> to vector<8x16xf32>
    %c0_2 = arith.constant 0 : index
    %c0_3 = arith.constant 0 : index
    %2 = vector.load %arg3[%c0_2, %c0_3] : memref<16x96xf32, #tpu.memory_space<vmem>>, vector<16x32xf32>
    %cst = arith.constant dense<0.000000e+00> : vector<8x32xf32>
    %3 = tpu.matmul %1, %2, %cst {dimension_numbers = #tpu.dot_dimension_numbers<[1], [0], [0], [1], [0, 0, 1, 1], [], []>} : vector<8x16xf32>, vector<16x32xf32>, vector<8x32xf32> -> vector<8x32xf32>
    %4 = vector.extract_strided_slice %3 {offsets = [0, 0], sizes = [8, 8], strides = [1, 1]} : vector<8x32xf32> to vector<8x8xf32>
    %c0_4 = arith.constant 0 : index
    %c0_5 = arith.constant 0 : index
    %c0_6 = arith.constant 0 : index
    %c0_7 = arith.constant 0 : index
    %5 = vector.load %arg4[%c0_4, %c0_5, %c0_6, %c0_7] : memref<1x4x8x8xf32, #tpu.memory_space<vmem>>, vector<1x1x8x8xf32>
    %6 = vector.shape_cast %5 : vector<1x1x8x8xf32> to vector<8x8xf32>
    %7 = vector.shape_cast %4 : vector<8x8xf32> to vector<1x1x8x8xf32>
    tpu.vector_store %arg4[%c0_4, %c0_5, %c0_6, %c0_7], %7 {strides = array<i32>} : memref<1x4x8x8xf32, #tpu.memory_space<vmem>>, vector<1x1x8x8xf32>,
    %8 = vector.extract_strided_slice %3 {offsets = [0, 8], sizes = [8, 8], strides = [1, 1]} : vector<8x32xf32> to vector<8x8xf32>
    %c0_8 = arith.constant 0 : index
    %c1 = arith.constant 1 : index
    %c0_9 = arith.constant 0 : index
    %c0_10 = arith.constant 0 : index
    %9 = vector.load %arg4[%c0_8, %c1, %c0_9, %c0_10] : memref<1x4x8x8xf32, #tpu.memory_space<vmem>>, vector<1x1x8x8xf32>
    %10 = vector.shape_cast %9 : vector<1x1x8x8xf32> to vector<8x8xf32>
    %11 = vector.shape_cast %8 : vector<8x8xf32> to vector<1x1x8x8xf32>
    tpu.vector_store %arg4[%c0_8, %c1, %c0_9, %c0_10], %11 {strides = array<i32>} : memref<1x4x8x8xf32, #tpu.memory_space<vmem>>, vector<1x1x8x8xf32>,
    %12 = vector.extract_strided_slice %3 {offsets = [0, 16], sizes = [8, 8], strides = [1, 1]} : vector<8x32xf32> to vector<8x8xf32>
    %c0_11 = arith.constant 0 : index
    %c2 = arith.constant 2 : index
    %c0_12 = arith.constant 0 : index
    %c0_13 = arith.constant 0 : index
    %13 = vector.load %arg4[%c0_11, %c2, %c0_12, %c0_13] : memref<1x4x8x8xf32, #tpu.memory_space<vmem>>, vector<1x1x8x8xf32>
    %14 = vector.shape_cast %13 : vector<1x1x8x8xf32> to vector<8x8xf32>
    %15 = vector.shape_cast %12 : vector<8x8xf32> to vector<1x1x8x8xf32>
    tpu.vector_store %arg4[%c0_11, %c2, %c0_12, %c0_13], %15 {strides = array<i32>} : memref<1x4x8x8xf32, #tpu.memory_space<vmem>>, vector<1x1x8x8xf32>,
    %16 = vector.extract_strided_slice %3 {offsets = [0, 24], sizes = [8, 8], strides = [1, 1]} : vector<8x32xf32> to vector<8x8xf32>
    %c0_14 = arith.constant 0 : index
    %c3 = arith.constant 3 : index
    %c0_15 = arith.constant 0 : index
    %c0_16 = arith.constant 0 : index
    %17 = vector.load %arg4[%c0_14, %c3, %c0_15, %c0_16] : memref<1x4x8x8xf32, #tpu.memory_space<vmem>>, vector<1x1x8x8xf32>
    %18 = vector.shape_cast %17 : vector<1x1x8x8xf32> to vector<8x8xf32>
    %19 = vector.shape_cast %16 : vector<8x8xf32> to vector<1x1x8x8xf32>
    tpu.vector_store %arg4[%c0_14, %c3, %c0_15, %c0_16], %19 {strides = array<i32>} : memref<1x4x8x8xf32, #tpu.memory_space<vmem>>, vector<1x1x8x8xf32>,
    %c0_17 = arith.constant 0 : index
    %c32 = arith.constant 32 : index
    %20 = vector.load %arg3[%c0_17, %c32] : memref<16x96xf32, #tpu.memory_space<vmem>>, vector<16x32xf32>
    %cst_18 = arith.constant dense<0.000000e+00> : vector<8x32xf32>
    %21 = tpu.matmul %1, %20, %cst_18 {dimension_numbers = #tpu.dot_dimension_numbers<[1], [0], [0], [1], [0, 0, 1, 1], [], []>} : vector<8x16xf32>, vector<16x32xf32>, vector<8x32xf32> -> vector<8x32xf32>
    %22 = vector.extract_strided_slice %21 {offsets = [0, 0], sizes = [8, 8], strides = [1, 1]} : vector<8x32xf32> to vector<8x8xf32>
    %c0_19 = arith.constant 0 : index
    %c0_20 = arith.constant 0 : index
    %c0_21 = arith.constant 0 : index
    %c0_22 = arith.constant 0 : index
    %23 = vector.load %arg5[%c0_19, %c0_20, %c0_21, %c0_22] : memref<1x4x8x8xf32, #tpu.memory_space<vmem>>, vector<1x1x8x8xf32>
    %24 = vector.shape_cast %23 : vector<1x1x8x8xf32> to vector<8x8xf32>
    %25 = vector.shape_cast %22 : vector<8x8xf32> to vector<1x1x8x8xf32>
    tpu.vector_store %arg5[%c0_19, %c0_20, %c0_21, %c0_22], %25 {strides = array<i32>} : memref<1x4x8x8xf32, #tpu.memory_space<vmem>>, vector<1x1x8x8xf32>,
    %26 = vector.extract_strided_slice %21 {offsets = [0, 8], sizes = [8, 8], strides = [1, 1]} : vector<8x32xf32> to vector<8x8xf32>
    %c0_23 = arith.constant 0 : index
    %c1_24 = arith.constant 1 : index
    %c0_25 = arith.constant 0 : index
    %c0_26 = arith.constant 0 : index
    %27 = vector.load %arg5[%c0_23, %c1_24, %c0_25, %c0_26] : memref<1x4x8x8xf32, #tpu.memory_space<vmem>>, vector<1x1x8x8xf32>
    %28 = vector.shape_cast %27 : vector<1x1x8x8xf32> to vector<8x8xf32>
    %29 = vector.shape_cast %26 : vector<8x8xf32> to vector<1x1x8x8xf32>
    tpu.vector_store %arg5[%c0_23, %c1_24, %c0_25, %c0_26], %29 {strides = array<i32>} : memref<1x4x8x8xf32, #tpu.memory_space<vmem>>, vector<1x1x8x8xf32>,
    %30 = vector.extract_strided_slice %21 {offsets = [0, 16], sizes = [8, 8], strides = [1, 1]} : vector<8x32xf32> to vector<8x8xf32>
    %c0_27 = arith.constant 0 : index
    %c2_28 = arith.constant 2 : index
    %c0_29 = arith.constant 0 : index
    %c0_30 = arith.constant 0 : index
    %31 = vector.load %arg5[%c0_27, %c2_28, %c0_29, %c0_30] : memref<1x4x8x8xf32, #tpu.memory_space<vmem>>, vector<1x1x8x8xf32>
    %32 = vector.shape_cast %31 : vector<1x1x8x8xf32> to vector<8x8xf32>
    %33 = vector.shape_cast %30 : vector<8x8xf32> to vector<1x1x8x8xf32>
    tpu.vector_store %arg5[%c0_27, %c2_28, %c0_29, %c0_30], %33 {strides = array<i32>} : memref<1x4x8x8xf32, #tpu.memory_space<vmem>>, vector<1x1x8x8xf32>,
    %34 = vector.extract_strided_slice %21 {offsets = [0, 24], sizes = [8, 8], strides = [1, 1]} : vector<8x32xf32> to vector<8x8xf32>
    %c0_31 = arith.constant 0 : index
    %c3_32 = arith.constant 3 : index
    %c0_33 = arith.constant 0 : index
    %c0_34 = arith.constant 0 : index
    %35 = vector.load %arg5[%c0_31, %c3_32, %c0_33, %c0_34] : memref<1x4x8x8xf32, #tpu.memory_space<vmem>>, vector<1x1x8x8xf32>
    %36 = vector.shape_cast %35 : vector<1x1x8x8xf32> to vector<8x8xf32>
    %37 = vector.shape_cast %34 : vector<8x8xf32> to vector<1x1x8x8xf32>
    tpu.vector_store %arg5[%c0_31, %c3_32, %c0_33, %c0_34], %37 {strides = array<i32>} : memref<1x4x8x8xf32, #tpu.memory_space<vmem>>, vector<1x1x8x8xf32>,
    %c0_35 = arith.constant 0 : index
    %c64 = arith.constant 64 : index
    %38 = vector.load %arg3[%c0_35, %c64] : memref<16x96xf32, #tpu.memory_space<vmem>>, vector<16x32xf32>
    %cst_36 = arith.constant dense<0.000000e+00> : vector<8x32xf32>
    %39 = tpu.matmul %1, %38, %cst_36 {dimension_numbers = #tpu.dot_dimension_numbers<[1], [0], [0], [1], [0, 0, 1, 1], [], []>} : vector<8x16xf32>, vector<16x32xf32>, vector<8x32xf32> -> vector<8x32xf32>
    %40 = vector.extract_strided_slice %39 {offsets = [0, 0], sizes = [8, 8], strides = [1, 1]} : vector<8x32xf32> to vector<8x8xf32>
    %c0_37 = arith.constant 0 : index
    %c0_38 = arith.constant 0 : index
    %c0_39 = arith.constant 0 : index
    %c0_40 = arith.constant 0 : index
    %41 = vector.load %arg6[%c0_37, %c0_38, %c0_39, %c0_40] : memref<1x4x8x8xf32, #tpu.memory_space<vmem>>, vector<1x1x8x8xf32>
    %42 = vector.shape_cast %41 : vector<1x1x8x8xf32> to vector<8x8xf32>
    %43 = vector.shape_cast %40 : vector<8x8xf32> to vector<1x1x8x8xf32>
    tpu.vector_store %arg6[%c0_37, %c0_38, %c0_39, %c0_40], %43 {strides = array<i32>} : memref<1x4x8x8xf32, #tpu.memory_space<vmem>>, vector<1x1x8x8xf32>,
    %44 = vector.extract_strided_slice %39 {offsets = [0, 8], sizes = [8, 8], strides = [1, 1]} : vector<8x32xf32> to vector<8x8xf32>
    %c0_41 = arith.constant 0 : index
    %c1_42 = arith.constant 1 : index
    %c0_43 = arith.constant 0 : index
    %c0_44 = arith.constant 0 : index
    %45 = vector.load %arg6[%c0_41, %c1_42, %c0_43, %c0_44] : memref<1x4x8x8xf32, #tpu.memory_space<vmem>>, vector<1x1x8x8xf32>
    %46 = vector.shape_cast %45 : vector<1x1x8x8xf32> to vector<8x8xf32>
    %47 = vector.shape_cast %44 : vector<8x8xf32> to vector<1x1x8x8xf32>
    tpu.vector_store %arg6[%c0_41, %c1_42, %c0_43, %c0_44], %47 {strides = array<i32>} : memref<1x4x8x8xf32, #tpu.memory_space<vmem>>, vector<1x1x8x8xf32>,
    %48 = vector.extract_strided_slice %39 {offsets = [0, 16], sizes = [8, 8], strides = [1, 1]} : vector<8x32xf32> to vector<8x8xf32>
    %c0_45 = arith.constant 0 : index
    %c2_46 = arith.constant 2 : index
    %c0_47 = arith.constant 0 : index
    %c0_48 = arith.constant 0 : index
    %49 = vector.load %arg6[%c0_45, %c2_46, %c0_47, %c0_48] : memref<1x4x8x8xf32, #tpu.memory_space<vmem>>, vector<1x1x8x8xf32>
    %50 = vector.shape_cast %49 : vector<1x1x8x8xf32> to vector<8x8xf32>
    %51 = vector.shape_cast %48 : vector<8x8xf32> to vector<1x1x8x8xf32>
    tpu.vector_store %arg6[%c0_45, %c2_46, %c0_47, %c0_48], %51 {strides = array<i32>} : memref<1x4x8x8xf32, #tpu.memory_space<vmem>>, vector<1x1x8x8xf32>,
    %52 = vector.extract_strided_slice %39 {offsets = [0, 24], sizes = [8, 8], strides = [1, 1]} : vector<8x32xf32> to vector<8x8xf32>
    %c0_49 = arith.constant 0 : index
    %c3_50 = arith.constant 3 : index
    %c0_51 = arith.constant 0 : index
    %c0_52 = arith.constant 0 : index
    %53 = vector.load %arg6[%c0_49, %c3_50, %c0_51, %c0_52] : memref<1x4x8x8xf32, #tpu.memory_space<vmem>>, vector<1x1x8x8xf32>
    %54 = vector.shape_cast %53 : vector<1x1x8x8xf32> to vector<8x8xf32>
    %55 = vector.shape_cast %52 : vector<8x8xf32> to vector<1x1x8x8xf32>
    tpu.vector_store %arg6[%c0_49, %c3_50, %c0_51, %c0_52], %55 {strides = array<i32>} : memref<1x4x8x8xf32, #tpu.memory_space<vmem>>, vector<1x1x8x8xf32>,
    return
  }
  func.func @transform_0(%arg0: i32, %arg1: i32) -> (i32, i32, i32) {
    %c0_i32 = arith.constant 0 : i32
    %c0_i32_0 = arith.constant 0 : i32
    return %arg0, %arg1, %c0_i32 : i32, i32, i32
  }
  func.func @transform_1(%arg0: i32, %arg1: i32) -> (i32, i32) {
    %c0_i32 = arith.constant 0 : i32
    %c0_i32_0 = arith.constant 0 : i32
    %c0_i32_1 = arith.constant 0 : i32
    return %c0_i32, %c0_i32_0 : i32, i32
  }
  func.func @transform_2(%arg0: i32, %arg1: i32) -> (i32, i32, i32, i32) {
    %c0_i32 = arith.constant 0 : i32
    %c0_i32_0 = arith.constant 0 : i32
    %c0_i32_1 = arith.constant 0 : i32
    return %arg0, %c0_i32, %arg1, %c0_i32_0 : i32, i32, i32, i32
  }
  func.func @transform_3(%arg0: i32, %arg1: i32) -> (i32, i32, i32, i32) {
    %c0_i32 = arith.constant 0 : i32
    %c0_i32_0 = arith.constant 0 : i32
    %c0_i32_1 = arith.constant 0 : i32
    return %arg0, %c0_i32, %arg1, %c0_i32_0 : i32, i32, i32, i32
  }
  func.func @transform_4(%arg0: i32, %arg1: i32) -> (i32, i32, i32, i32) {
    %c0_i32 = arith.constant 0 : i32
    %c0_i32_0 = arith.constant 0 : i32
    %c0_i32_1 = arith.constant 0 : i32
    return %arg0, %c0_i32, %arg1, %c0_i32_0 : i32, i32, i32, i32
  }
}

</mosaic_0001>

<llo_original>
// kernel: tpu_custom_call.1
$region0: #{tpu_custom_call.1}
  #allocation0 [shape = 'u32[]', space=smem, size = 0x4, offset = 0x4, fixed_abs, tag = 'smem constant byte address 0x4 - core index']
  #allocation1 [shape = 'u32[72,128]{1,0:T(1,128)}', space=vmem, size = 0x9000, scoped, tag = 'internal scratch']
  %s0 = inlined_call_operand.hbm [shape: f32[2,8,16], index: 0, kind: input, shape index: {}]
  %s1 = inlined_call_operand.hbm [shape: f32[16,96], index: 1, kind: input, shape index: {}]
  %s2 = inlined_call_operand.hbm [shape: f32[2,4,8,8], index: 2, kind: output, shape index: {0}]
  %s3 = inlined_call_operand.hbm [shape: f32[2,4,8,8], index: 3, kind: output, shape index: {1}]
  %s4 = inlined_call_operand.hbm [shape: f32[2,4,8,8], index: 4, kind: output, shape index: {2}]
  %5 = xla_tuple %s2, %s3, %s4
  %s6 = sld [smem:[#allocation0]]
  $region65: #{tpu_custom_call.1} parent=0
    _
  %s8 = ssub.s32 1, %s6
  %s9 = scalar_select 0, %s8, %s6
  $region1: #{tpu_custom_call.1} parent=0
    #allocation2 [shape = 'u8[8192]{0}', space=vmem, size = 0x2000, scoped, tag = 'input window, operand 0']
    #allocation3 [shape = 's32[2]{0}', space=sflag, size = 0x8, scoped, tag = 'scoped memory for tpu_custom_call.1']
    #allocation4 [shape = 's32[2]{0}', space=sflag, size = 0x8, scoped, tag = 'scoped memory for tpu_custom_call.1']
    #allocation5 [shape = 'u8[8192]{0}', space=vmem, size = 0x2000, scoped, tag = 'input window, operand 1, single buffered']
    #allocation6 [shape = 's32[1]{0}', space=sflag, size = 0x4, scoped, tag = 'scoped memory for tpu_custom_call.1']
    #allocation7 [shape = 'u8[32768]{0}', space=vmem, size = 0x8000, scoped, tag = 'output window, operand 0']
    #allocation8 [shape = 'u8[32768]{0}', space=vmem, size = 0x8000, scoped, tag = 'output window, operand 1']
    #allocation9 [shape = 's32[2]{0}', space=sflag, size = 0x8, scoped, tag = 'scoped memory for tpu_custom_call.1']
    #allocation10 [shape = 'u8[32768]{0}', space=vmem, size = 0x8000, scoped, tag = 'output window, operand 2']
    %10 = vsyncpa [#allocation3], 0
    %s11 = scalar_lea.sflag [#allocation3], 1
    %12 = vsyncpa %s11, 0
    %13 = vsyncpa [#allocation6], 0
    %14 = vsyncpa [#allocation4], 0
    %s15 = scalar_lea.sflag [#allocation4], 1
    %16 = vsyncpa %s15, 0
    %17 = vsyncpa [#allocation9], 0
    %s18 = scalar_lea.sflag [#allocation9], 1
    %19 = vsyncpa %s18, 0
    loop: start=0, step=1, limit=4
    $region2: #{tpu_custom_call.1} parent=1 // loop_pre_header
      _
    $region3: #{tpu_custom_call.1} parent=1 // loop_header
      %s21 = sphi 0, %s25
      %p22 = scmp.ge.s32.totalorder %s21, 4
      %s28 = sphi 0, %s40
      %s29 = sphi 0, %s36
      %s30 = sphi 0, %s28
      %s31 = sphi 0, %s29
      %s32 = sphi 0, %s30
      %s33 = sphi 0, %s31
      %s45 = sphi 0, %s47
      %s48 = sphi 0, %s45
      %s49 = sphi 0, %s48
      %s65 = sphi 0, %s49
      %s69 = sphi 0, %s69
      %s71 = sphi 0, %s69
      %s72 = sphi 0, %s71
      %s86 = sphi 0, %s72
      %s94 = sphi 0, %s96
      %s97 = sphi 0, %s94
      %s98 = sphi 0, %s97
      %s114 = sphi 0, %s98
      %s122 = sphi 0, %s124
      %s125 = sphi 0, %s122
      %s126 = sphi 0, %s125
      %s142 = sphi 0, %s126
      %s150 = sphi 0, %s152
      %s153 = sphi 0, %s150
      %s154 = sphi 0, %s153
      %s170 = sphi 0, %s154
    $region4: #{tpu_custom_call.1} parent=1 // loop_header_branch
      %24 = sbr.rel (%p22) target = $region8
    $region5: #{tpu_custom_call.1} parent=1 // loop_body
      %s26 = ssub.s32 %s21, 1
      %s27 = ssub.s32 %s21, 2
      %s34 = sadd.s32 1, %s29
      %p35 = scmp.ge.s32.totalorder %s34, 1
      %s36 = scalar_select %p35, 0, %s34
      %s37 = sadd.s32 1, %s28
      %s38 = scalar_select %p35, %s37, %s28
      %p39 = scmp.ge.s32.totalorder %s38, 2
      %s40 = scalar_select %p39, 0, %s38
      %s41 = ssub.s32 %s28, %s40
      %s42 = ssub.s32 %s29, %s36
      %s43 = sor.u32 %s41, %s42
      %p44 = scmp.eq.s32.totalorder %s43, 0
      %s46 = sadd.s32 %s45, 1
      %s47 = scalar_select %p44, %s45, %s46
      %p50 = pneg %p44
      %p51 = scmp.eq.s32.totalorder %s21, 1
      %p52 = por %p50, %p51
      %p53 = scmp.ne.s32.totalorder %s45, %s48
      %p54 = scmp.eq.s32.totalorder %s21, 0
      %p55 = por %p53, %p54
      %p56 = scmp.ne.s32.totalorder %s45, %s48
      %p57 = scmp.eq.s32.totalorder %s26, 1
      %p58 = por %p56, %p57
      %p59 = scmp.ne.s32.totalorder %s48, %s49
      %p60 = scmp.eq.s32.totalorder %s26, 0
      %p61 = por %p59, %p60
      %p62 = scmp.ne.s32.totalorder %s48, %s49
      %p63 = scmp.eq.s32.totalorder %s27, 1
      %p64 = por %p62, %p63
      %p66 = scmp.ne.s32.totalorder %s49, %s65
      %p67 = scmp.eq.s32.totalorder %s27, 0
      %p68 = por %p66, %p67
      %s70 = sadd.s32 %s69, 1
      %p73 = scmp.eq.s32.totalorder %s21, 1
      %p74 = scmp.ne.s32.totalorder %s69, %s71
      %p75 = scmp.eq.s32.totalorder %s21, 0
      %p76 = por %p74, %p75
      %p77 = scmp.ne.s32.totalorder %s69, %s71
      %p78 = scmp.eq.s32.totalorder %s26, 1
      %p79 = por %p77, %p78
      %p80 = scmp.ne.s32.totalorder %s71, %s72
      %p81 = scmp.eq.s32.totalorder %s26, 0
      %p82 = por %p80, %p81
      %p83 = scmp.ne.s32.totalorder %s71, %s72
      %p84 = scmp.eq.s32.totalorder %s27, 1
      %p85 = por %p83, %p84
      %p87 = scmp.ne.s32.totalorder %s72, %s86
      %p88 = scmp.eq.s32.totalorder %s27, 0
      %p89 = por %p87, %p88
      %s90 = ssub.s32 %s28, %s40
      %s91 = ssub.s32 %s29, %s36
      %s92 = sor.u32 %s90, %s91
      %p93 = scmp.eq.s32.totalorder %s92, 0
      %s95 = sadd.s32 %s94, 1
      %s96 = scalar_select %p93, %s94, %s95
      %p99 = pneg %p93
      %p100 = scmp.eq.s32.totalorder %s21, 1
      %p101 = por %p99, %p100
      %p102 = scmp.ne.s32.totalorder %s94, %s97
      %p103 = scmp.eq.s32.totalorder %s21, 0
      %p104 = por %p102, %p103
      %p105 = scmp.ne.s32.totalorder %s94, %s97
      %p106 = scmp.eq.s32.totalorder %s26, 1
      %p107 = por %p105, %p106
      %p108 = scmp.ne.s32.totalorder %s97, %s98
      %p109 = scmp.eq.s32.totalorder %s26, 0
      %p110 = por %p108, %p109
      %p111 = scmp.ne.s32.totalorder %s97, %s98
      %p112 = scmp.eq.s32.totalorder %s27, 1
      %p113 = por %p111, %p112
      %p115 = scmp.ne.s32.totalorder %s98, %s114
      %p116 = scmp.eq.s32.totalorder %s27, 0
      %p117 = por %p115, %p116
      %s118 = ssub.s32 %s28, %s40
      %s119 = ssub.s32 %s29, %s36
      %s120 = sor.u32 %s118, %s119
      %p121 = scmp.eq.s32.totalorder %s120, 0
      %s123 = sadd.s32 %s122, 1
      %s124 = scalar_select %p121, %s122, %s123
      %p127 = pneg %p121
      %p128 = scmp.eq.s32.totalorder %s21, 1
      %p129 = por %p127, %p128
      %p130 = scmp.ne.s32.totalorder %s122, %s125
      %p131 = scmp.eq.s32.totalorder %s21, 0
      %p132 = por %p130, %p131
      %p133 = scmp.ne.s32.totalorder %s122, %s125
      %p134 = scmp.eq.s32.totalorder %s26, 1
      %p135 = por %p133, %p134
      %p136 = scmp.ne.s32.totalorder %s125, %s126
      %p137 = scmp.eq.s32.totalorder %s26, 0
      %p138 = por %p136, %p137
      %p139 = scmp.ne.s32.totalorder %s125, %s126
      %p140 = scmp.eq.s32.totalorder %s27, 1
      %p141 = por %p139, %p140
      %p143 = scmp.ne.s32.totalorder %s126, %s142
      %p144 = scmp.eq.s32.totalorder %s27, 0
      %p145 = por %p143, %p144
      %s146 = ssub.s32 %s28, %s40
      %s147 = ssub.s32 %s29, %s36
      %s148 = sor.u32 %s146, %s147
      %p149 = scmp.eq.s32.totalorder %s148, 0
      %s151 = sadd.s32 %s150, 1
      %s152 = scalar_select %p149, %s150, %s151
      %p155 = pneg %p149
      %p156 = scmp.eq.s32.totalorder %s21, 1
      %p157 = por %p155, %p156
      %p158 = scmp.ne.s32.totalorder %s150, %s153
      %p159 = scmp.eq.s32.totalorder %s21, 0
      %p160 = por %p158, %p159
      %p161 = scmp.ne.s32.totalorder %s150, %s153
      %p162 = scmp.eq.s32.totalorder %s26, 1
      %p163 = por %p161, %p162
      %p164 = scmp.ne.s32.totalorder %s153, %s154
      %p165 = scmp.eq.s32.totalorder %s26, 0
      %p166 = por %p164, %p165
      %p167 = scmp.ne.s32.totalorder %s153, %s154
      %p168 = scmp.eq.s32.totalorder %s27, 1
      %p169 = por %p167, %p168
      %p171 = scmp.ne.s32.totalorder %s154, %s170
      %p172 = scmp.eq.s32.totalorder %s27, 0
      %p173 = por %p171, %p172
      %p174 = scmp.le.s32.totalorder 1, %s21
      %p175 = scmp.lt.s32.totalorder %s21, 3
      %p176 = pnand %p174, %p175
      %p177 = pneg %p176
      // Predicated region
      $region9: #{tpu_custom_call.1} parent=5 // pred_check
        _
      $region10: #{tpu_custom_call.1} parent=5 // pred_check_branch
        %179 = sbr.rel (%p176) target = $region12
      $region11: #{tpu_custom_call.1} parent=5 // pred_region
        %s180 = ssub.s32 %s21, 1
        // Predicated region
        $region13: #{tpu_custom_call.1} parent=11 // pred_check
          %p181 = pneg %p82
        $region14: #{tpu_custom_call.1} parent=11 // pred_check_branch
          %183 = sbr.rel (%p181) target = $region16
        $region15: #{tpu_custom_call.1} parent=11 // pred_region
          %185 = vsyncadd [#allocation6], 0
          %s186 = sshll.u32 %s1, 4
          %s187 = int_to_ptr.hbm [resolvable:$true] %s186
          %s188 = sshll.u32 [#allocation5], 4
          %s189 = int_to_ptr.vmem [resolvable:$true] %s188
          %194 = dma.hbm_to_vmem [thread:$0]  %s187, 256, %s189, [#allocation6], 128, 128, 8
        $region16: #{tpu_custom_call.1} parent=11 // pred_fallthru
          _
      $region12: #{tpu_custom_call.1} parent=5 // pred_fallthru
        _
      %p195 = scmp.lt.s32.totalorder %s21, 2
      // Predicated region
      $region17: #{tpu_custom_call.1} parent=5 // pred_check
        %p196 = pneg %p195
      $region18: #{tpu_custom_call.1} parent=5 // pred_check_branch
        %198 = sbr.rel (%p196) target = $region20
      $region19: #{tpu_custom_call.1} parent=5 // pred_region
        // Predicated region
        $region21: #{tpu_custom_call.1} parent=19 // pred_check
          %p199 = pneg %p55
        $region22: #{tpu_custom_call.1} parent=19 // pred_check_branch
          %201 = sbr.rel (%p199) target = $region24
        $region23: #{tpu_custom_call.1} parent=19 // pred_region
          %s202 = sand.u32 %s45, 1
          %s203 = scalar_lea.sflag [#allocation3], %s202
          %s204 = sand.u32 %s45, 1
          %s205 = smul.addr %s204, 8
          %s206 = scalar_lea.vmem [#allocation2], %s205
          %208 = vsyncadd %s203, 0
          %s209 = sadd.s32 %s29, %s28
          %s210 = smul.addr %s209, 8
          %s211 = scalar_lea.hbm %s0, %s210
          %s213 = sshll.u32 %s211, 4
          %s214 = int_to_ptr.hbm [resolvable:$true] %s213
          %s215 = sshll.u32 %s206, 4
          %s216 = int_to_ptr.vmem [resolvable:$true] %s215
          %218 = dma.hbm_to_vmem [thread:$0]  %s214, 128, %s216, %s203
        $region24: #{tpu_custom_call.1} parent=19 // pred_fallthru
          _
      $region20: #{tpu_custom_call.1} parent=5 // pred_fallthru
        _
      %p219 = scmp.le.s32.totalorder 1, %s21
      %p220 = scmp.lt.s32.totalorder %s21, 3
      %p221 = pnand %p219, %p220
      %p222 = pneg %p221
      // Predicated region
      $region25: #{tpu_custom_call.1} parent=5 // pred_check
        _
      $region26: #{tpu_custom_call.1} parent=5 // pred_check_branch
        %224 = sbr.rel (%p221) target = $region28
      $region27: #{tpu_custom_call.1} parent=5 // pred_region
        %s225 = ssub.s32 %s21, 1
        %s226 = sand.u32 %s48, 1
        %s227 = scalar_lea.sflag [#allocation3], %s226
        %s228 = sand.u32 %s48, 1
        %s229 = smul.addr %s228, 8
        %s230 = scalar_lea.vmem [#allocation2], %s229
        // Predicated region
        $region29: #{tpu_custom_call.1} parent=27 // pred_check
          %p231 = pneg %p61
        $region30: #{tpu_custom_call.1} parent=27 // pred_check_branch
          %233 = sbr.rel (%p231) target = $region32
        $region31: #{tpu_custom_call.1} parent=27 // pred_region
          %235 = dma.done %s227, 128
        $region32: #{tpu_custom_call.1} parent=27 // pred_fallthru
          _
        // Predicated region
        $region33: #{tpu_custom_call.1} parent=27 // pred_check
          %p236 = pneg %p82
        $region34: #{tpu_custom_call.1} parent=27 // pred_check_branch
          %238 = sbr.rel (%p236) target = $region36
        $region35: #{tpu_custom_call.1} parent=27 // pred_region
          %240 = dma.done [#allocation6], 256
        $region36: #{tpu_custom_call.1} parent=27 // pred_fallthru
          _
        %s241 = sand.u32 %s48, 1
        %s242 = scalar_lea.sflag [#allocation3], %s241
        %s243 = sand.u32 %s48, 1
        %s244 = smul.addr %s243, 8
        %s245 = scalar_lea.vmem [#allocation2], %s244
        %p246 = pneg %p61
        %p247 = pneg %p58
        %p248 = pneg %p82
        %p249 = pneg %p79
        %p250 = pneg %p110
        %p251 = pneg %p107
        %s252 = sand.u32 %s97, 1
        %s253 = scalar_lea.sflag [#allocation4], %s252
        %s254 = sand.u32 %s97, 1
        %s255 = smul.addr %s254, 32
        %s256 = scalar_lea.vmem [#allocation7], %s255
        %p257 = pneg %p138
        %p258 = pneg %p135
        %s259 = sand.u32 %s26, 1
        %s260 = scalar_lea.sflag [#allocation9], %s259
        %s261 = sand.u32 %s125, 1
        %s262 = smul.addr %s261, 32
        %s263 = scalar_lea.vmem [#allocation8], %s262
        %p264 = pneg %p166
        %p265 = pneg %p163
        %s266 = sand.u32 %s26, 1
        %s267 = scalar_lea.sflag [#allocation9], %s266
        %s268 = sand.u32 %s153, 1
        %s269 = smul.addr %s268, 32
        %s270 = scalar_lea.vmem [#allocation10], %s269
        %v271 = vld [vmem:[%s230] sm:$0xff]
        %v272 = vld [vmem:[#allocation5] sm:$0xff]
        %v273 = vld [vmem:[#allocation5 + $0x8] sm:$0xff]
        %vm274 = vcmask 130048
        %v276 = vsel %vm274, %v271, 0
        %278 = vmatpush.msra.mxu0 0.0
        %279 = vmatpush.msra.mxu0 0.0
        %280 = vmatpush.msra.mxu0 0.0
        %281 = vmatpush.msra.mxu0 0.0
        %282 = vmatpush.msra.mxu0 0.0
        %283 = vmatpush.msra.mxu0 0.0
        %284 = vmatpush.msra.mxu0 0.0
        %285 = vmatpush.msra.mxu0 0.0
        %286 = vmatpush.msra.mxu0 0.0
        %287 = vmatpush.msra.mxu0 0.0
        %288 = vmatpush.msra.mxu0 0.0
        %289 = vmatpush.msra.mxu0 0.0
        %290 = vmatpush.msra.mxu0 0.0
        %291 = vmatpush.msra.mxu0 0.0
        %292 = vmatpush.msra.mxu0 %v273
        %293 = vmatpush.msra.mxu0 %v272
        %294 = vmatmul.f32.gmra.mxu0 %v276
        %v295 = vpop.f32.mrf.mxu0
        %v296 = vadd.f32 0.0, %v295
        %297 = vdwg.mxu0
        %vm298 = vcmask 64512
        %299 = vst.msk [vmem:[%s256] sm:$0xff] %vm298, %v296
        %301 = vrot.lane.b32.xlu0 %v296, 120
        %v302 = vpop.permute.xlu0 %301
        %s304 = scalar_lea.vmem %s256, 8 [#allocation7]
        %305 = vst.msk [vmem:[%s304] sm:$0xff] %vm298, %v302
        %306 = vrot.lane.b32.xlu0 %v296, 112
        %v307 = vpop.permute.xlu0 %306
        %s309 = scalar_lea.vmem %s256, 16 [#allocation7]
        %310 = vst.msk [vmem:[%s309] sm:$0xff] %vm298, %v307
        %311 = vrot.lane.b32.xlu0 %v296, 104
        %v312 = vpop.permute.xlu0 %311
        %s314 = scalar_lea.vmem %s256, 24 [#allocation7]
        %315 = vst.msk [vmem:[%s314] sm:$0xff] %vm298, %v312
        %v316 = vld [vmem:[#allocation5] sm:$0xff]
        %v317 = vld [vmem:[#allocation5 + $0x8] sm:$0xff]
        %320 = vrot.lane.b32.xlu0 %v316, 96
        %v321 = vpop.permute.xlu0 %320
        %322 = vrot.lane.b32.xlu0 %v317, 96
        %v323 = vpop.permute.xlu0 %322
        %326 = vmatpush.msra.mxu0 0.0
        %327 = vmatpush.msra.mxu0 0.0
        %328 = vmatpush.msra.mxu0 0.0
        %329 = vmatpush.msra.mxu0 0.0
        %330 = vmatpush.msra.mxu0 0.0
        %331 = vmatpush.msra.mxu0 0.0
        %332 = vmatpush.msra.mxu0 0.0
        %333 = vmatpush.msra.mxu0 0.0
        %334 = vmatpush.msra.mxu0 0.0
        %335 = vmatpush.msra.mxu0 0.0
        %336 = vmatpush.msra.mxu0 0.0
        %337 = vmatpush.msra.mxu0 0.0
        %338 = vmatpush.msra.mxu0 0.0
        %339 = vmatpush.msra.mxu0 0.0
        %340 = vmatpush.msra.mxu0 %v323
        %341 = vmatpush.msra.mxu0 %v321
        %342 = vmatmul.f32.gmra.mxu0 %v276
        %v343 = vpop.f32.mrf.mxu0
        %v344 = vadd.f32 0.0, %v343
        %345 = vdwg.mxu0
        %346 = vst.msk [vmem:[%s263] sm:$0xff] %vm298, %v344
        %348 = vrot.lane.b32.xlu0 %v344, 120
        %v349 = vpop.permute.xlu0 %348
        %s351 = scalar_lea.vmem %s263, 8 [#allocation8]
        %352 = vst.msk [vmem:[%s351] sm:$0xff] %vm298, %v349
        %353 = vrot.lane.b32.xlu0 %v344, 112
        %v354 = vpop.permute.xlu0 %353
        %s356 = scalar_lea.vmem %s263, 16 [#allocation8]
        %357 = vst.msk [vmem:[%s356] sm:$0xff] %vm298, %v354
        %358 = vrot.lane.b32.xlu0 %v344, 104
        %v359 = vpop.permute.xlu0 %358
        %s361 = scalar_lea.vmem %s263, 24 [#allocation8]
        %362 = vst.msk [vmem:[%s361] sm:$0xff] %vm298, %v359
        %v363 = vld [vmem:[#allocation5] sm:$0xff]
        %v364 = vld [vmem:[#allocation5 + $0x8] sm:$0xff]
        %367 = vrot.lane.b32.xlu0 %v363, 64
        %v368 = vpop.permute.xlu0 %367
        %369 = vrot.lane.b32.xlu0 %v364, 64
        %v370 = vpop.permute.xlu0 %369
        %373 = vmatpush.msra.mxu0 0.0
        %374 = vmatpush.msra.mxu0 0.0
        %375 = vmatpush.msra.mxu0 0.0
        %376 = vmatpush.msra.mxu0 0.0
        %377 = vmatpush.msra.mxu0 0.0
        %378 = vmatpush.msra.mxu0 0.0
        %379 = vmatpush.msra.mxu0 0.0
        %380 = vmatpush.msra.mxu0 0.0
        %381 = vmatpush.msra.mxu0 0.0
        %382 = vmatpush.msra.mxu0 0.0
        %383 = vmatpush.msra.mxu0 0.0
        %384 = vmatpush.msra.mxu0 0.0
        %385 = vmatpush.msra.mxu0 0.0
        %386 = vmatpush.msra.mxu0 0.0
        %387 = vmatpush.msra.mxu0 %v370
        %388 = vmatpush.msra.mxu0 %v368
        %389 = vmatmul.f32.gmra.mxu0 %v276
        %v390 = vpop.f32.mrf.mxu0
        %v391 = vadd.f32 0.0, %v390
        %392 = vdwg.mxu0
        %393 = vst.msk [vmem:[%s270] sm:$0xff] %vm298, %v391
        %395 = vrot.lane.b32.xlu0 %v391, 120
        %v396 = vpop.permute.xlu0 %395
        %s398 = scalar_lea.vmem %s270, 8 [#allocation10]
        %399 = vst.msk [vmem:[%s398] sm:$0xff] %vm298, %v396
        %400 = vrot.lane.b32.xlu0 %v391, 112
        %v401 = vpop.permute.xlu0 %400
        %s403 = scalar_lea.vmem %s270, 16 [#allocation10]
        %404 = vst.msk [vmem:[%s403] sm:$0xff] %vm298, %v401
        %405 = vrot.lane.b32.xlu0 %v391, 104
        %v406 = vpop.permute.xlu0 %405
        %s408 = scalar_lea.vmem %s270, 24 [#allocation10]
        %409 = vst.msk [vmem:[%s408] sm:$0xff] %vm298, %v406
        %s410 = sand.u32 %s97, 1
        %s411 = scalar_lea.sflag [#allocation4], %s410
        %s412 = sand.u32 %s97, 1
        %s413 = smul.addr %s412, 32
        %s414 = scalar_lea.vmem [#allocation7], %s413
        %s415 = sand.u32 %s26, 1
        %s416 = scalar_lea.sflag [#allocation9], %s415
        %s417 = sand.u32 %s125, 1
        %s418 = smul.addr %s417, 32
        %s419 = scalar_lea.vmem [#allocation8], %s418
        %s420 = sand.u32 %s26, 1
        %s421 = scalar_lea.sflag [#allocation9], %s420
        %s422 = sand.u32 %s153, 1
        %s423 = smul.addr %s422, 32
        %s424 = scalar_lea.vmem [#allocation10], %s423
        // Predicated region
        $region37: #{tpu_custom_call.1} parent=27 // pred_check
          %p425 = pneg %p107
        $region38: #{tpu_custom_call.1} parent=27 // pred_check_branch
          %427 = sbr.rel (%p425) target = $region40
        $region39: #{tpu_custom_call.1} parent=27 // pred_region
          %429 = vsyncadd %s411, 0
          %s430 = smul.addr %s30, 4
          %s431 = sadd.s32 %s31, %s430
          %s432 = smul.addr %s431, 8
          %s433 = scalar_lea.hbm %s2, %s432
          %s434 = sshll.u32 %s414, 4
          %s435 = int_to_ptr.vmem [resolvable:$true] %s434
          %s436 = sshll.u32 %s433, 4
          %s437 = int_to_ptr.hbm [resolvable:$true] %s436
          %442 = dma.vmem_to_hbm [thread:$0]  %s435, 512, %s437, %s411, 128, 128, 8
        $region40: #{tpu_custom_call.1} parent=27 // pred_fallthru
          _
        // Predicated region
        $region41: #{tpu_custom_call.1} parent=27 // pred_check
          %p443 = pneg %p135
        $region42: #{tpu_custom_call.1} parent=27 // pred_check_branch
          %445 = sbr.rel (%p443) target = $region44
        $region43: #{tpu_custom_call.1} parent=27 // pred_region
          %447 = vsyncadd %s416, 0
          %s448 = smul.addr %s30, 4
          %s449 = sadd.s32 %s31, %s448
          %s450 = smul.addr %s449, 8
          %s451 = scalar_lea.hbm %s3, %s450
          %s452 = sshll.u32 %s419, 4
          %s453 = int_to_ptr.vmem [resolvable:$true] %s452
          %s454 = sshll.u32 %s451, 4
          %s455 = int_to_ptr.hbm [resolvable:$true] %s454
          %460 = dma.vmem_to_hbm [thread:$0]  %s453, 512, %s455, %s416, 128, 128, 8
        $region44: #{tpu_custom_call.1} parent=27 // pred_fallthru
          _
        // Predicated region
        $region45: #{tpu_custom_call.1} parent=27 // pred_check
          %p461 = pneg %p163
        $region46: #{tpu_custom_call.1} parent=27 // pred_check_branch
          %463 = sbr.rel (%p461) target = $region48
        $region47: #{tpu_custom_call.1} parent=27 // pred_region
          %465 = vsyncadd %s421, 0
          %s466 = smul.addr %s30, 4
          %s467 = sadd.s32 %s31, %s466
          %s468 = smul.addr %s467, 8
          %s469 = scalar_lea.hbm %s4, %s468
          %s470 = sshll.u32 %s424, 4
          %s471 = int_to_ptr.vmem [resolvable:$true] %s470
          %s472 = sshll.u32 %s469, 4
          %s473 = int_to_ptr.hbm [resolvable:$true] %s472
          %478 = dma.vmem_to_hbm [thread:$0]  %s471, 512, %s473, %s421, 128, 128, 8
        $region48: #{tpu_custom_call.1} parent=27 // pred_fallthru
          _
      $region28: #{tpu_custom_call.1} parent=5 // pred_fallthru
        _
      %p479 = scmp.le.s32.totalorder 2, %s21
      // Predicated region
      $region49: #{tpu_custom_call.1} parent=5 // pred_check
        %p480 = pneg %p479
      $region50: #{tpu_custom_call.1} parent=5 // pred_check_branch
        %482 = sbr.rel (%p480) target = $region52
      $region51: #{tpu_custom_call.1} parent=5 // pred_region
        %s483 = ssub.s32 %s21, 2
        // Predicated region
        $region53: #{tpu_custom_call.1} parent=51 // pred_check
          %p484 = pneg %p113
        $region54: #{tpu_custom_call.1} parent=51 // pred_check_branch
          %486 = sbr.rel (%p484) target = $region56
        $region55: #{tpu_custom_call.1} parent=51 // pred_region
          %s487 = sand.u32 %s98, 1
          %s488 = scalar_lea.sflag [#allocation4], %s487
          %s489 = sand.u32 %s98, 1
          %s490 = smul.addr %s489, 32
          %s491 = scalar_lea.vmem [#allocation7], %s490
          %493 = dma.done %s488, 512
        $region56: #{tpu_custom_call.1} parent=51 // pred_fallthru
          _
        // Predicated region
        $region57: #{tpu_custom_call.1} parent=51 // pred_check
          %p494 = pneg %p141
        $region58: #{tpu_custom_call.1} parent=51 // pred_check_branch
          %496 = sbr.rel (%p494) target = $region60
        $region59: #{tpu_custom_call.1} parent=51 // pred_region
          %s497 = sand.u32 %s27, 1
          %s498 = scalar_lea.sflag [#allocation9], %s497
          %s499 = sand.u32 %s126, 1
          %s500 = smul.addr %s499, 32
          %s501 = scalar_lea.vmem [#allocation8], %s500
          %503 = dma.done %s498, 512
        $region60: #{tpu_custom_call.1} parent=51 // pred_fallthru
          _
        // Predicated region
        $region61: #{tpu_custom_call.1} parent=51 // pred_check
          %p504 = pneg %p169
        $region62: #{tpu_custom_call.1} parent=51 // pred_check_branch
          %506 = sbr.rel (%p504) target = $region64
        $region63: #{tpu_custom_call.1} parent=51 // pred_region
          %s507 = sand.u32 %s27, 1
          %s508 = scalar_lea.sflag [#allocation9], %s507
          %s509 = sand.u32 %s154, 1
          %s510 = smul.addr %s509, 32
          %s511 = scalar_lea.vmem [#allocation10], %s510
          %513 = dma.done %s508, 512
        $region64: #{tpu_custom_call.1} parent=51 // pred_fallthru
          _
      $region52: #{tpu_custom_call.1} parent=5 // pred_fallthru
        _
    $region6: #{tpu_custom_call.1} parent=1 // loop_footer
      %s25 = sadd.s32 1, %s21
    $region7: #{tpu_custom_call.1} parent=1 // loop_footer_branch
      %20 = sbr.rel target = $region3
    $region8: #{tpu_custom_call.1} parent=1 // loop_exit
      _
    %514 = vsyncpa [#allocation3], 1
    %s515 = scalar_lea.sflag [#allocation3], 1
    %516 = vsyncpa %s515, 1
    %517 = vsyncpa [#allocation6], 1
    %518 = vsyncpa [#allocation4], 1
    %s519 = scalar_lea.sflag [#allocation4], 1
    %520 = vsyncpa %s519, 1
    %521 = vsyncpa [#allocation9], 1
    %s522 = scalar_lea.sflag [#allocation9], 1
    %523 = vsyncpa %s522, 1

</llo_original>
